<compile_context>
chip_gen: v6e
topology: v6e:2x2x1
jax: 0.10.0
libtpu: 0.0.40
codegen_flags: <defaults>
</compile_context>

<pallas_src>
import functools

import jax
import jax.numpy as jnp
from jax.experimental import pallas as pl
from jax.experimental.pallas import tpu as pltpu

IN_DIM = 28 * 28          # 784
HID_DIM = 300
OUT_DIM = 10
HID_PAD = 384             # 300 -> 384 (3 * 128), lane-dense intermediate
OUT_PAD = 128             # 10  -> 128, lane-dense (unmasked) output stores


def _round_up(x, m):
    return (x + m - 1) // m * m


def mlp_kernel(x_ref, w1_ref, b1_ref, w2_ref, b2_ref, o_ref):
    # fc1: bf16 MXU matmul, f32 accumulate.
    h = jnp.dot(x_ref[...], w1_ref[...], preferred_element_type=jnp.float32)
    # bias + ReLU in f32 on the VPU.
    h = jnp.maximum(h + b1_ref[...], 0.0)
    # fc2: bf16 MXU matmul, f32 accumulate.
    out = jnp.dot(h.astype(w2_ref.dtype), w2_ref[...],
                  preferred_element_type=jnp.float32)
    o_ref[...] = (out + b2_ref[...]).astype(o_ref.dtype)


@functools.partial(jax.jit, static_argnames=("tile_b",))
def mlp_forward(x_images, w1, b1, w2, b2, *, tile_b=512):
    # Flatten NCHW images exactly like torch's x.view(-1, 28*28).
    B = x_images.shape[0]
    x = x_images.reshape(B, IN_DIM)

    # Tile size: multiple of 16 (bf16 sublane packing); don't exceed padded B.
    tile_b = min(tile_b, _round_up(B, 16))
    tile_b = _round_up(tile_b, 16)
    Bp = _round_up(B, tile_b)

    # --- wrapper-side casts & zero padding (numerically exact) ---
    x_p = jnp.zeros((Bp, IN_DIM), jnp.bfloat16).at[:B].set(
        x.astype(jnp.bfloat16))
    w1_p = jnp.zeros((IN_DIM, HID_PAD), jnp.bfloat16).at[:, :HID_DIM].set(
        w1.astype(jnp.bfloat16))
    b1_p = jnp.zeros((1, HID_PAD), jnp.float32).at[0, :HID_DIM].set(b1)
    w2_p = jnp.zeros((HID_PAD, OUT_PAD), jnp.bfloat16).at[:HID_DIM, :OUT_DIM].set(
        w2.astype(jnp.bfloat16))
    b2_p = jnp.zeros((1, OUT_PAD), jnp.float32).at[0, :OUT_DIM].set(b2)

    grid = (Bp // tile_b,)

    out_padded = pl.pallas_call(
        mlp_kernel,
        out_shape=jax.ShapeDtypeStruct((Bp, OUT_PAD), jnp.float32),
        grid=grid,
        in_specs=[
            # Streamed, double-buffered batch tiles of x.
            pl.BlockSpec((tile_b, IN_DIM), lambda i: (i, 0)),
            # Weights / biases: constant index maps -> VMEM-resident.
            pl.BlockSpec((IN_DIM, HID_PAD), lambda i: (0, 0)),
            pl.BlockSpec((1, HID_PAD), lambda i: (0, 0)),
            pl.BlockSpec((HID_PAD, OUT_PAD), lambda i: (0, 0)),
            pl.BlockSpec((1, OUT_PAD), lambda i: (0, 0)),
        ],
        out_specs=pl.BlockSpec((tile_b, OUT_PAD), lambda i: (i, 0)),
        compiler_params=pltpu.CompilerParams(
            dimension_semantics=("parallel",)),
    )(x_p, w1_p, b1_p, w2_p, b2_p)

    # Slice away batch + lane padding in plain JAX.
    return out_padded[:B, :OUT_DIM]


def init_params(key):
    # Deterministic init mimicking torch.nn.Linear default:
    # U(-1/sqrt(fan_in), 1/sqrt(fan_in)) for both weight and bias.
    k1, k2, k3, k4 = jax.random.split(key, 4)
    bound1 = 1.0 / jnp.sqrt(IN_DIM)
    bound2 = 1.0 / jnp.sqrt(HID_DIM)
    # Stored as (in, out) so the kernel does x @ W (torch stores (out, in) and
    # computes x @ W.T — numerically equivalent convention).
    w1 = jax.random.uniform(k1, (IN_DIM, HID_DIM), jnp.float32, -bound1, bound1)
    b1 = jax.random.uniform(k2, (HID_DIM,), jnp.float32, -bound1, bound1)
    w2 = jax.random.uniform(k3, (HID_DIM, OUT_DIM), jnp.float32, -bound2, bound2)
    b2 = jax.random.uniform(k4, (OUT_DIM,), jnp.float32, -bound2, bound2)
    return w1, b1, w2, b2


if __name__ == "__main__":
    key = jax.random.PRNGKey(0)
    k_x, k_p = jax.random.split(key)

    # Small batch of MNIST-shaped images, NCHW.
    x = jax.random.normal(k_x, (2, 1, 28, 28), dtype=jnp.float32)
    w1, b1, w2, b2 = init_params(k_p)

    out = mlp_forward(x, w1, b1, w2, b2)
    out = jax.block_until_ready(out)
    assert out.shape == (2, 10)

    # Reference: f32 math on bf16-rounded inputs (matches the MXU bf16 path
    # with f32 accumulation).
    f32 = lambda a: a.astype(jnp.bfloat16).astype(jnp.float32)
    hp = jax.lax.Precision.HIGHEST
    x_flat = x.reshape(x.shape[0], -1)
    h_ref = jnp.maximum(
        jnp.dot(f32(x_flat), f32(w1), precision=hp) + b1, 0.0)
    ref = jnp.dot(f32(h_ref), f32(w2), precision=hp) + b2
    assert jnp.allclose(out, ref, atol=2e-2, rtol=2e-2), (
        jnp.max(jnp.abs(out - ref)))

    print("KERNEL_OK")
</pallas_src>

<mosaic_0001>
module attributes {stable_mosaic.version = 11 : i64} {
  func.func @mlp_kernel(%arg0: i32, %arg1: memref<16x784xbf16, #tpu.memory_space<vmem>>, %arg2: memref<784x384xbf16, #tpu.memory_space<vmem>>, %arg3: memref<1x384xf32, #tpu.memory_space<vmem>>, %arg4: memref<384x128xbf16, #tpu.memory_space<vmem>>, %arg5: memref<1x128xf32, #tpu.memory_space<vmem>>, %arg6: memref<16x128xf32, #tpu.memory_space<vmem>>) attributes {dimension_semantics = [#tpu.dimension_semantics<parallel>], iteration_bounds = array<i64: 1>, scalar_prefetch = 0 : i64, scratch_operands = 0 : i64, tpu.core_type = #tpu.core_type<tc>, window_params = [{transform_indices = @transform_0, window_bounds = array<i64: 16, 784>}, {pipeline_mode = #tpu.pipeline_mode<synchronous>, transform_indices = @transform_1, window_bounds = array<i64: 784, 384>}, {pipeline_mode = #tpu.pipeline_mode<synchronous>, transform_indices = @transform_2, window_bounds = array<i64: 1, 384>}, {pipeline_mode = #tpu.pipeline_mode<synchronous>, transform_indices = @transform_3, window_bounds = array<i64: 384, 128>}, {pipeline_mode = #tpu.pipeline_mode<synchronous>, transform_indices = @transform_4, window_bounds = array<i64: 1, 128>}, {transform_indices = @transform_5, window_bounds = array<i64: 16, 128>}]} {
    %c0 = arith.constant 0 : index
    %c0_0 = arith.constant 0 : index
    %0 = vector.load %arg1[%c0, %c0_0] : memref<16x784xbf16, #tpu.memory_space<vmem>>, vector<16x784xbf16>
    %c0_1 = arith.constant 0 : index
    %c0_2 = arith.constant 0 : index
    %1 = vector.load %arg2[%c0_1, %c0_2] : memref<784x384xbf16, #tpu.memory_space<vmem>>, vector<784x384xbf16>
    %cst = arith.constant dense<0.000000e+00> : vector<16x384xf32>
    %2 = tpu.matmul %0, %1, %cst {dimension_numbers = #tpu.dot_dimension_numbers<[1], [0], [0], [1], [0, 0, 1, 1], [], []>} : vector<16x784xbf16>, vector<784x384xbf16>, vector<16x384xf32> -> vector<16x384xf32>
    %c0_3 = arith.constant 0 : index
    %c0_4 = arith.constant 0 : index
    %3 = vector.load %arg3[%c0_3, %c0_4] : memref<1x384xf32, #tpu.memory_space<vmem>>, vector<1x384xf32>
    %4 = vector.broadcast %3 : vector<1x384xf32> to vector<16x384xf32>
    %5 = arith.addf %2, %4 : vector<16x384xf32>
    %cst_5 = arith.constant 0.000000e+00 : f32
    %6 = vector.broadcast %cst_5 : f32 to vector<16x384xf32>
    %7 = arith.maximumf %5, %6 : vector<16x384xf32>
    %8 = arith.truncf %7 : vector<16x384xf32> to vector<16x384xbf16>
    %c0_6 = arith.constant 0 : index
    %c0_7 = arith.constant 0 : index
    %9 = vector.load %arg4[%c0_6, %c0_7] : memref<384x128xbf16, #tpu.memory_space<vmem>>, vector<384x128xbf16>
    %cst_8 = arith.constant dense<0.000000e+00> : vector<16x128xf32>
    %10 = tpu.matmul %8, %9, %cst_8 {dimension_numbers = #tpu.dot_dimension_numbers<[1], [0], [0], [1], [0, 0, 1, 1], [], []>} : vector<16x384xbf16>, vector<384x128xbf16>, vector<16x128xf32> -> vector<16x128xf32>
    %c0_9 = arith.constant 0 : index
    %c0_10 = arith.constant 0 : index
    %11 = vector.load %arg5[%c0_9, %c0_10] : memref<1x128xf32, #tpu.memory_space<vmem>>, vector<1x128xf32>
    %12 = vector.broadcast %11 : vector<1x128xf32> to vector<16x128xf32>
    %13 = arith.addf %10, %12 : vector<16x128xf32>
    %c0_11 = arith.constant 0 : index
    %c0_12 = arith.constant 0 : index
    %14 = vector.load %arg6[%c0_11, %c0_12] : memref<16x128xf32, #tpu.memory_space<vmem>>, vector<16x128xf32>
    tpu.vector_store %arg6[%c0_11, %c0_12], %13 {strides = array<i32>} : memref<16x128xf32, #tpu.memory_space<vmem>>, vector<16x128xf32>,
    return
  }
  func.func @transform_0(%arg0: i32) -> (i32, i32) {
    %c0_i32 = arith.constant 0 : i32
    %c0_i32_0 = arith.constant 0 : i32
    return %arg0, %c0_i32 : i32, i32
  }
  func.func @transform_1(%arg0: i32) -> (i32, i32) {
    %c0_i32 = arith.constant 0 : i32
    %c0_i32_0 = arith.constant 0 : i32
    %c0_i32_1 = arith.constant 0 : i32
    return %c0_i32, %c0_i32_0 : i32, i32
  }
  func.func @transform_2(%arg0: i32) -> (i32, i32) {
    %c0_i32 = arith.constant 0 : i32
    %c0_i32_0 = arith.constant 0 : i32
    %c0_i32_1 = arith.constant 0 : i32
    return %c0_i32, %c0_i32_0 : i32, i32
  }
  func.func @transform_3(%arg0: i32) -> (i32, i32) {
    %c0_i32 = arith.constant 0 : i32
    %c0_i32_0 = arith.constant 0 : i32
    %c0_i32_1 = arith.constant 0 : i32
    return %c0_i32, %c0_i32_0 : i32, i32
  }
  func.func @transform_4(%arg0: i32) -> (i32, i32) {
    %c0_i32 = arith.constant 0 : i32
    %c0_i32_0 = arith.constant 0 : i32
    %c0_i32_1 = arith.constant 0 : i32
    return %c0_i32, %c0_i32_0 : i32, i32
  }
  func.func @transform_5(%arg0: i32) -> (i32, i32) {
    %c0_i32 = arith.constant 0 : i32
    %c0_i32_0 = arith.constant 0 : i32
    return %arg0, %c0_i32 : i32, i32
  }
}

</mosaic_0001>

<llo_original>
// kernel: mlp_forward.1
$region0: #{mlp_forward.1}
  #allocation0 [shape = 'u32[]', space=smem, size = 0x4, offset = 0x4, fixed_abs, tag = 'smem constant byte address 0x4 - core index']
  #allocation1 [shape = 'u32[144,128]{1,0:T(1,128)}', space=vmem, size = 0x12000, scoped, tag = 'internal scratch']
  %s0 = inlined_call_operand.vmem [shape: bf16[16,784], index: 0, kind: input, shape index: {}]
  %s1 = inlined_call_operand.vmem [shape: bf16[784,384], index: 1, kind: input, shape index: {}]
  %s2 = inlined_call_operand.vmem [shape: f32[1,384], index: 2, kind: input, shape index: {}]
  %s3 = inlined_call_operand.vmem [shape: bf16[384,128], index: 3, kind: input, shape index: {}]
  %s4 = inlined_call_operand.vmem [shape: f32[1,128], index: 4, kind: input, shape index: {}]
  %s5 = inlined_call_operand.vmem [shape: f32[16,128], index: 5, kind: output, shape index: {}]
  %s6 = sld [smem:[#allocation0]]
  $region30: #{mlp_forward.1} parent=0
    _
  %s8 = ssub.s32 1, %s6
  %s9 = scalar_select 0, %s8, %s6
  // Predicated region
  $region2: #{mlp_forward.1} parent=0 // pred_check
    _
  $region3: #{mlp_forward.1} parent=0 // pred_check_branch
    %11 = sbr.rel (0) target = $region5
  $region4: #{mlp_forward.1} parent=0 // pred_region
    _
  $region5: #{mlp_forward.1} parent=0 // pred_fallthru
    _
  // Predicated region
  $region6: #{mlp_forward.1} parent=0 // pred_check
    _
  $region7: #{mlp_forward.1} parent=0 // pred_check_branch
    %13 = sbr.rel (0) target = $region9
  $region8: #{mlp_forward.1} parent=0 // pred_region
    _
  $region9: #{mlp_forward.1} parent=0 // pred_fallthru
    _
  // Predicated region
  $region10: #{mlp_forward.1} parent=0 // pred_check
    _
  $region11: #{mlp_forward.1} parent=0 // pred_check_branch
    %15 = sbr.rel (0) target = $region13
  $region12: #{mlp_forward.1} parent=0 // pred_region
    _
  $region13: #{mlp_forward.1} parent=0 // pred_fallthru
    _
  // Predicated region
  $region14: #{mlp_forward.1} parent=0 // pred_check
    _
  $region15: #{mlp_forward.1} parent=0 // pred_check_branch
    %17 = sbr.rel (0) target = $region17
  $region16: #{mlp_forward.1} parent=0 // pred_region
    _
  $region17: #{mlp_forward.1} parent=0 // pred_fallthru
    _
  // Predicated region
  $region18: #{mlp_forward.1} parent=0 // pred_check
    _
  $region19: #{mlp_forward.1} parent=0 // pred_check_branch
    %19 = sbr.rel (0) target = $region21
  $region20: #{mlp_forward.1} parent=0 // pred_region
    _
  $region21: #{mlp_forward.1} parent=0 // pred_fallthru
    _
  %v21 = vld [vmem:[%s0] sm:$0xff]
  %v22 = vld [vmem:[%s0 + $0x8] sm:$0xff]
  %v23 = vld [vmem:[%s0 + $0x10] sm:$0xff]
  %v24 = vld [vmem:[%s0 + $0x18] sm:$0xf]
  %v25 = vld [vmem:[%s0 + $0x1c] sm:$0xff]
  %v26 = vld [vmem:[%s0 + $0x24] sm:$0xff]
  %v27 = vld [vmem:[%s0 + $0x2c] sm:$0xff]
  %v28 = vld [vmem:[%s0 + $0x34] sm:$0xf]
  %v29 = vld [vmem:[%s1] sm:$0xff]
  %v30 = vld [vmem:[%s1 + $0x8] sm:$0xf]
  %v31 = vld [vmem:[%s1 + $0xc] sm:$0xff]
  %v32 = vld [vmem:[%s1 + $0x14] sm:$0xf]
  %v33 = vld [vmem:[%s1 + $0x18] sm:$0xff]
  %v34 = vld [vmem:[%s1 + $0x20] sm:$0xf]
  %v35 = vld [vmem:[%s1 + $0x24] sm:$0xff]
  %v36 = vld [vmem:[%s1 + $0x2c] sm:$0xf]
  %v37 = vld [vmem:[%s1 + $0x30] sm:$0xff]
  %v38 = vld [vmem:[%s1 + $0x38] sm:$0xf]
  %v39 = vld [vmem:[%s1 + $0x3c] sm:$0xff]
  %v40 = vld [vmem:[%s1 + $0x44] sm:$0xf]
  %v41 = vld [vmem:[%s1 + $0x48] sm:$0xff]
  %v42 = vld [vmem:[%s1 + $0x50] sm:$0xf]
  %v43 = vld [vmem:[%s1 + $0x54] sm:$0xff]
  %v44 = vld [vmem:[%s1 + $0x5c] sm:$0xf]
  %v45 = vld [vmem:[%s1 + $0x60] sm:$0xff]
  %v46 = vld [vmem:[%s1 + $0x68] sm:$0xf]
  %v47 = vld [vmem:[%s1 + $0x6c] sm:$0xff]
  %v48 = vld [vmem:[%s1 + $0x74] sm:$0xf]
  %v49 = vld [vmem:[%s1 + $0x78] sm:$0xff]
  %v50 = vld [vmem:[%s1 + $0x80] sm:$0xf]
  %v51 = vld [vmem:[%s1 + $0x84] sm:$0xff]
  %v52 = vld [vmem:[%s1 + $0x8c] sm:$0xf]
  %v53 = vld [vmem:[%s1 + $0x90] sm:$0xff]
  %v54 = vld [vmem:[%s1 + $0x98] sm:$0xf]
  %v55 = vld [vmem:[%s1 + $0x9c] sm:$0xff]
  %v56 = vld [vmem:[%s1 + $0xa4] sm:$0xf]
  %v57 = vld [vmem:[%s1 + $0xa8] sm:$0xff]
  %v58 = vld [vmem:[%s1 + $0xb0] sm:$0xf]
  %v59 = vld [vmem:[%s1 + $0xb4] sm:$0xff]
  %v60 = vld [vmem:[%s1 + $0xbc] sm:$0xf]
  %v61 = vld [vmem:[%s1 + $0xc0] sm:$0xff]
  %v62 = vld [vmem:[%s1 + $0xc8] sm:$0xf]
  %v63 = vld [vmem:[%s1 + $0xcc] sm:$0xff]
  %v64 = vld [vmem:[%s1 + $0xd4] sm:$0xf]
  %v65 = vld [vmem:[%s1 + $0xd8] sm:$0xff]
  %v66 = vld [vmem:[%s1 + $0xe0] sm:$0xf]
  %v67 = vld [vmem:[%s1 + $0xe4] sm:$0xff]
  %v68 = vld [vmem:[%s1 + $0xec] sm:$0xf]
  %v69 = vld [vmem:[%s1 + $0xf0] sm:$0xff]
  %v70 = vld [vmem:[%s1 + $0xf8] sm:$0xf]
  %v71 = vld [vmem:[%s1 + $0xfc] sm:$0xff]
  %v72 = vld [vmem:[%s1 + $0x104] sm:$0xf]
  %v73 = vld [vmem:[%s1 + $0x108] sm:$0xff]
  %v74 = vld [vmem:[%s1 + $0x110] sm:$0xf]
  %v75 = vld [vmem:[%s1 + $0x114] sm:$0xff]
  %v76 = vld [vmem:[%s1 + $0x11c] sm:$0xf]
  %v77 = vld [vmem:[%s1 + $0x120] sm:$0xff]
  %v78 = vld [vmem:[%s1 + $0x128] sm:$0xf]
  %v79 = vld [vmem:[%s1 + $0x12c] sm:$0xff]
  %v80 = vld [vmem:[%s1 + $0x134] sm:$0xf]
  %v81 = vld [vmem:[%s1 + $0x138] sm:$0xff]
  %v82 = vld [vmem:[%s1 + $0x140] sm:$0xf]
  %v83 = vld [vmem:[%s1 + $0x144] sm:$0xff]
  %v84 = vld [vmem:[%s1 + $0x14c] sm:$0xf]
  %v85 = vld [vmem:[%s1 + $0x150] sm:$0xff]
  %v86 = vld [vmem:[%s1 + $0x158] sm:$0xf]
  %v87 = vld [vmem:[%s1 + $0x15c] sm:$0xff]
  %v88 = vld [vmem:[%s1 + $0x164] sm:$0xf]
  %v89 = vld [vmem:[%s1 + $0x168] sm:$0xff]
  %v90 = vld [vmem:[%s1 + $0x170] sm:$0xf]
  %v91 = vld [vmem:[%s1 + $0x174] sm:$0xff]
  %v92 = vld [vmem:[%s1 + $0x17c] sm:$0xf]
  %v93 = vld [vmem:[%s1 + $0x180] sm:$0xff]
  %v94 = vld [vmem:[%s1 + $0x188] sm:$0xf]
  %v95 = vld [vmem:[%s1 + $0x18c] sm:$0xff]
  %v96 = vld [vmem:[%s1 + $0x194] sm:$0xf]
  %v97 = vld [vmem:[%s1 + $0x198] sm:$0xff]
  %v98 = vld [vmem:[%s1 + $0x1a0] sm:$0xf]
  %v99 = vld [vmem:[%s1 + $0x1a4] sm:$0xff]
  %v100 = vld [vmem:[%s1 + $0x1ac] sm:$0xf]
  %v101 = vld [vmem:[%s1 + $0x1b0] sm:$0xff]
  %v102 = vld [vmem:[%s1 + $0x1b8] sm:$0xf]
  %v103 = vld [vmem:[%s1 + $0x1bc] sm:$0xff]
  %v104 = vld [vmem:[%s1 + $0x1c4] sm:$0xf]
  %v105 = vld [vmem:[%s1 + $0x1c8] sm:$0xff]
  %v106 = vld [vmem:[%s1 + $0x1d0] sm:$0xf]
  %v107 = vld [vmem:[%s1 + $0x1d4] sm:$0xff]
  %v108 = vld [vmem:[%s1 + $0x1dc] sm:$0xf]
  %v109 = vld [vmem:[%s1 + $0x1e0] sm:$0xff]
  %v110 = vld [vmem:[%s1 + $0x1e8] sm:$0xf]
  %v111 = vld [vmem:[%s1 + $0x1ec] sm:$0xff]
  %v112 = vld [vmem:[%s1 + $0x1f4] sm:$0xf]
  %v113 = vld [vmem:[%s1 + $0x1f8] sm:$0xff]
  %v114 = vld [vmem:[%s1 + $0x200] sm:$0xf]
  %v115 = vld [vmem:[%s1 + $0x204] sm:$0xff]
  %v116 = vld [vmem:[%s1 + $0x20c] sm:$0xf]
  %v117 = vld [vmem:[%s1 + $0x210] sm:$0xff]
  %v118 = vld [vmem:[%s1 + $0x218] sm:$0xf]
  %v119 = vld [vmem:[%s1 + $0x21c] sm:$0xff]
  %v120 = vld [vmem:[%s1 + $0x224] sm:$0xf]
  %v121 = vld [vmem:[%s1 + $0x228] sm:$0xff]
  %v122 = vld [vmem:[%s1 + $0x230] sm:$0xf]
  %v123 = vld [vmem:[%s1 + $0x234] sm:$0xff]
  %v124 = vld [vmem:[%s1 + $0x23c] sm:$0xf]
  %v125 = vld [vmem:[%s1 + $0x240] sm:$0xff]
  %v126 = vld [vmem:[%s1 + $0x248] sm:$0xf]
  %v127 = vld [vmem:[%s1 + $0x24c] sm:$0xff]
  %v128 = vld [vmem:[%s1 + $0x254] sm:$0xf]
  %v129 = vld [vmem:[%s1 + $0x258] sm:$0xff]
  %v130 = vld [vmem:[%s1 + $0x260] sm:$0xf]
  %v131 = vld [vmem:[%s1 + $0x264] sm:$0xff]
  %v132 = vld [vmem:[%s1 + $0x26c] sm:$0xf]
  %v133 = vld [vmem:[%s1 + $0x270] sm:$0xff]
  %v134 = vld [vmem:[%s1 + $0x278] sm:$0xf]
  %v135 = vld [vmem:[%s1 + $0x27c] sm:$0xff]
  %v136 = vld [vmem:[%s1 + $0x284] sm:$0xf]
  %v137 = vld [vmem:[%s1 + $0x288] sm:$0xff]
  %v138 = vld [vmem:[%s1 + $0x290] sm:$0xf]
  %v139 = vld [vmem:[%s1 + $0x294] sm:$0xff]
  %v140 = vld [vmem:[%s1 + $0x29c] sm:$0xf]
  %v141 = vld [vmem:[%s1 + $0x2a0] sm:$0xff]
  %v142 = vld [vmem:[%s1 + $0x2a8] sm:$0xf]
  %v143 = vld [vmem:[%s1 + $0x2ac] sm:$0xff]
  %v144 = vld [vmem:[%s1 + $0x2b4] sm:$0xf]
  %v145 = vld [vmem:[%s1 + $0x2b8] sm:$0xff]
  %v146 = vld [vmem:[%s1 + $0x2c0] sm:$0xf]
  %v147 = vld [vmem:[%s1 + $0x2c4] sm:$0xff]
  %v148 = vld [vmem:[%s1 + $0x2cc] sm:$0xf]
  %v149 = vld [vmem:[%s1 + $0x2d0] sm:$0xff]
  %v150 = vld [vmem:[%s1 + $0x2d8] sm:$0xf]
  %v151 = vld [vmem:[%s1 + $0x2dc] sm:$0xff]
  %v152 = vld [vmem:[%s1 + $0x2e4] sm:$0xf]
  %v153 = vld [vmem:[%s1 + $0x2e8] sm:$0xff]
  %v154 = vld [vmem:[%s1 + $0x2f0] sm:$0xf]
  %v155 = vld [vmem:[%s1 + $0x2f4] sm:$0xff]
  %v156 = vld [vmem:[%s1 + $0x2fc] sm:$0xf]
  %v157 = vld [vmem:[%s1 + $0x300] sm:$0xff]
  %v158 = vld [vmem:[%s1 + $0x308] sm:$0xf]
  %v159 = vld [vmem:[%s1 + $0x30c] sm:$0xff]
  %v160 = vld [vmem:[%s1 + $0x314] sm:$0xf]
  %v161 = vld [vmem:[%s1 + $0x318] sm:$0xff]
  %v162 = vld [vmem:[%s1 + $0x320] sm:$0xf]
  %v163 = vld [vmem:[%s1 + $0x324] sm:$0xff]
  %v164 = vld [vmem:[%s1 + $0x32c] sm:$0xf]
  %v165 = vld [vmem:[%s1 + $0x330] sm:$0xff]
  %v166 = vld [vmem:[%s1 + $0x338] sm:$0xf]
  %v167 = vld [vmem:[%s1 + $0x33c] sm:$0xff]
  %v168 = vld [vmem:[%s1 + $0x344] sm:$0xf]
  %v169 = vld [vmem:[%s1 + $0x348] sm:$0xff]
  %v170 = vld [vmem:[%s1 + $0x350] sm:$0xf]
  %v171 = vld [vmem:[%s1 + $0x354] sm:$0xff]
  %v172 = vld [vmem:[%s1 + $0x35c] sm:$0xf]
  %v173 = vld [vmem:[%s1 + $0x360] sm:$0xff]
  %v174 = vld [vmem:[%s1 + $0x368] sm:$0xf]
  %v175 = vld [vmem:[%s1 + $0x36c] sm:$0xff]
  %v176 = vld [vmem:[%s1 + $0x374] sm:$0xf]
  %v177 = vld [vmem:[%s1 + $0x378] sm:$0xff]
  %v178 = vld [vmem:[%s1 + $0x380] sm:$0xf]
  %v179 = vld [vmem:[%s1 + $0x384] sm:$0xff]
  %v180 = vld [vmem:[%s1 + $0x38c] sm:$0xf]
  %v181 = vld [vmem:[%s1 + $0x390] sm:$0xff]
  %v182 = vld [vmem:[%s1 + $0x398] sm:$0xf]
  %v183 = vld [vmem:[%s1 + $0x39c] sm:$0xff]
  %v184 = vld [vmem:[%s1 + $0x3a4] sm:$0xf]
  %v185 = vld [vmem:[%s1 + $0x3a8] sm:$0xff]
  %v186 = vld [vmem:[%s1 + $0x3b0] sm:$0xf]
  %v187 = vld [vmem:[%s1 + $0x3b4] sm:$0xff]
  %v188 = vld [vmem:[%s1 + $0x3bc] sm:$0xf]
  %v189 = vld [vmem:[%s1 + $0x3c0] sm:$0xff]
  %v190 = vld [vmem:[%s1 + $0x3c8] sm:$0xf]
  %v191 = vld [vmem:[%s1 + $0x3cc] sm:$0xff]
  %v192 = vld [vmem:[%s1 + $0x3d4] sm:$0xf]
  %v193 = vld [vmem:[%s1 + $0x3d8] sm:$0xff]
  %v194 = vld [vmem:[%s1 + $0x3e0] sm:$0xf]
  %v195 = vld [vmem:[%s1 + $0x3e4] sm:$0xff]
  %v196 = vld [vmem:[%s1 + $0x3ec] sm:$0xf]
  %v197 = vld [vmem:[%s1 + $0x3f0] sm:$0xff]
  %v198 = vld [vmem:[%s1 + $0x3f8] sm:$0xf]
  %v199 = vld [vmem:[%s1 + $0x3fc] sm:$0xff]
  %v200 = vld [vmem:[%s1 + $0x404] sm:$0xf]
  %v201 = vld [vmem:[%s1 + $0x408] sm:$0xff]
  %v202 = vld [vmem:[%s1 + $0x410] sm:$0xf]
  %v203 = vld [vmem:[%s1 + $0x414] sm:$0xff]
  %v204 = vld [vmem:[%s1 + $0x41c] sm:$0xf]
  %v205 = vld [vmem:[%s1 + $0x420] sm:$0xff]
  %v206 = vld [vmem:[%s1 + $0x428] sm:$0xf]
  %v207 = vld [vmem:[%s1 + $0x42c] sm:$0xff]
  %v208 = vld [vmem:[%s1 + $0x434] sm:$0xf]
  %v209 = vld [vmem:[%s1 + $0x438] sm:$0xff]
  %v210 = vld [vmem:[%s1 + $0x440] sm:$0xf]
  %v211 = vld [vmem:[%s1 + $0x444] sm:$0xff]
  %v212 = vld [vmem:[%s1 + $0x44c] sm:$0xf]
  %v213 = vld [vmem:[%s1 + $0x450] sm:$0xff]
  %v214 = vld [vmem:[%s1 + $0x458] sm:$0xf]
  %v215 = vld [vmem:[%s1 + $0x45c] sm:$0xff]
  %v216 = vld [vmem:[%s1 + $0x464] sm:$0xf]
  %v217 = vld [vmem:[%s1 + $0x468] sm:$0xff]
  %v218 = vld [vmem:[%s1 + $0x470] sm:$0xf]
  %v219 = vld [vmem:[%s1 + $0x474] sm:$0xff]
  %v220 = vld [vmem:[%s1 + $0x47c] sm:$0xf]
  %v221 = vld [vmem:[%s1 + $0x480] sm:$0xff]
  %v222 = vld [vmem:[%s1 + $0x488] sm:$0xf]
  %v223 = vld [vmem:[%s1 + $0x48c] sm:$0xff]
  %v224 = vld [vmem:[%s1 + $0x494] sm:$0xf]
  %v225 = vld [vmem:[%s2] sm:$0x7]
  %v227 = vlaneseq
  %v228 = vshrl.u32 %v227, 7
  %v229 = vsub.s32 0, %v228
  %v230 = vrot.slane %v225, %v229
  %v231 = vlaneseq
  %v232 = vshrl.u32 %v231, 7
  %v233 = vsub.s32 1, %v232
  %v234 = vrot.slane %v225, %v233
  %v235 = vlaneseq
  %v236 = vshrl.u32 %v235, 7
  %v237 = vsub.s32 2, %v236
  %v238 = vrot.slane %v225, %v237
  %v250 = vunpack.c.l.b16 %v21
  %v251 = vunpack.c.h.b16 %v21
  %v252 = vunpack.c.l.b16 %v22
  %v253 = vunpack.c.h.b16 %v22
  %v254 = vunpack.c.l.b16 %v23
  %v255 = vunpack.c.h.b16 %v23
  %v256 = vunpack.c.l.b16 %v24
  %v257 = vunpack.c.l.b16 %v25
  %v258 = vunpack.c.h.b16 %v25
  %v259 = vunpack.c.l.b16 %v26
  %v260 = vunpack.c.h.b16 %v26
  %v261 = vunpack.c.l.b16 %v27
  %v262 = vunpack.c.h.b16 %v27
  %v263 = vunpack.c.l.b16 %v28
  %v264 = vpack.c.b16 %v257, %v250
  %v265 = vpack.c.b16 %v258, %v251
  %v266 = vpack.c.b16 %v259, %v252
  %v267 = vpack.c.b16 %v260, %v253
  %v268 = vpack.c.b16 %v261, %v254
  %v269 = vpack.c.b16 %v262, %v255
  %v270 = vpack.c.b16 %v263, %v256
  %v473 = vunpack.c.l.b16 %v29
  %v474 = vunpack.c.h.b16 %v29
  %v475 = vunpack.c.l.b16 %v30
  %v476 = vunpack.c.l.b16 %v31
  %v477 = vunpack.c.h.b16 %v31
  %v478 = vunpack.c.l.b16 %v32
  %v479 = vunpack.c.l.b16 %v33
  %v480 = vunpack.c.h.b16 %v33
  %v481 = vunpack.c.l.b16 %v34
  %v482 = vunpack.c.l.b16 %v35
  %v483 = vunpack.c.h.b16 %v35
  %v484 = vunpack.c.l.b16 %v36
  %v485 = vunpack.c.l.b16 %v37
  %v486 = vunpack.c.h.b16 %v37
  %v487 = vunpack.c.l.b16 %v38
  %v488 = vunpack.c.l.b16 %v39
  %v489 = vunpack.c.h.b16 %v39
  %v490 = vunpack.c.l.b16 %v40
  %v491 = vunpack.c.l.b16 %v41
  %v492 = vunpack.c.h.b16 %v41
  %v493 = vunpack.c.l.b16 %v42
  %v494 = vunpack.c.l.b16 %v43
  %v495 = vunpack.c.h.b16 %v43
  %v496 = vunpack.c.l.b16 %v44
  %v497 = vunpack.c.l.b16 %v45
  %v498 = vunpack.c.h.b16 %v45
  %v499 = vunpack.c.l.b16 %v46
  %v500 = vunpack.c.l.b16 %v47
  %v501 = vunpack.c.h.b16 %v47
  %v502 = vunpack.c.l.b16 %v48
  %v503 = vunpack.c.l.b16 %v49
  %v504 = vunpack.c.h.b16 %v49
  %v505 = vunpack.c.l.b16 %v50
  %v506 = vunpack.c.l.b16 %v51
  %v507 = vunpack.c.h.b16 %v51
  %v508 = vunpack.c.l.b16 %v52
  %v509 = vunpack.c.l.b16 %v53
  %v510 = vunpack.c.h.b16 %v53
  %v511 = vunpack.c.l.b16 %v54
  %v512 = vunpack.c.l.b16 %v55
  %v513 = vunpack.c.h.b16 %v55
  %v514 = vunpack.c.l.b16 %v56
  %v515 = vunpack.c.l.b16 %v57
  %v516 = vunpack.c.h.b16 %v57
  %v517 = vunpack.c.l.b16 %v58
  %v518 = vunpack.c.l.b16 %v59
  %v519 = vunpack.c.h.b16 %v59
  %v520 = vunpack.c.l.b16 %v60
  %v521 = vunpack.c.l.b16 %v61
  %v522 = vunpack.c.h.b16 %v61
  %v523 = vunpack.c.l.b16 %v62
  %v524 = vunpack.c.l.b16 %v63
  %v525 = vunpack.c.h.b16 %v63
  %v526 = vunpack.c.l.b16 %v64
  %v527 = vunpack.c.l.b16 %v65
  %v528 = vunpack.c.h.b16 %v65
  %v529 = vunpack.c.l.b16 %v66
  %v530 = vunpack.c.l.b16 %v67
  %v531 = vunpack.c.h.b16 %v67
  %v532 = vunpack.c.l.b16 %v68
  %v533 = vunpack.c.l.b16 %v69
  %v534 = vunpack.c.h.b16 %v69
  %v535 = vunpack.c.l.b16 %v70
  %v536 = vunpack.c.l.b16 %v71
  %v537 = vunpack.c.h.b16 %v71
  %v538 = vunpack.c.l.b16 %v72
  %v539 = vunpack.c.l.b16 %v73
  %v540 = vunpack.c.h.b16 %v73
  %v541 = vunpack.c.l.b16 %v74
  %v542 = vunpack.c.l.b16 %v75
  %v543 = vunpack.c.h.b16 %v75
  %v544 = vunpack.c.l.b16 %v76
  %v545 = vunpack.c.l.b16 %v77
  %v546 = vunpack.c.h.b16 %v77
  %v547 = vunpack.c.l.b16 %v78
  %v548 = vunpack.c.l.b16 %v79
  %v549 = vunpack.c.h.b16 %v79
  %v550 = vunpack.c.l.b16 %v80
  %v551 = vunpack.c.l.b16 %v81
  %v552 = vunpack.c.h.b16 %v81
  %v553 = vunpack.c.l.b16 %v82
  %v554 = vunpack.c.l.b16 %v83
  %v555 = vunpack.c.h.b16 %v83
  %v556 = vunpack.c.l.b16 %v84
  %v557 = vunpack.c.l.b16 %v85
  %v558 = vunpack.c.h.b16 %v85
  %v559 = vunpack.c.l.b16 %v86
  %v560 = vunpack.c.l.b16 %v87
  %v561 = vunpack.c.h.b16 %v87
  %v562 = vunpack.c.l.b16 %v88
  %v563 = vunpack.c.l.b16 %v89
  %v564 = vunpack.c.h.b16 %v89
  %v565 = vunpack.c.l.b16 %v90
  %v566 = vunpack.c.l.b16 %v91
  %v567 = vunpack.c.h.b16 %v91
  %v568 = vunpack.c.l.b16 %v92
  %v569 = vunpack.c.l.b16 %v93
  %v570 = vunpack.c.h.b16 %v93
  %v571 = vunpack.c.l.b16 %v94
  %v572 = vunpack.c.l.b16 %v95
  %v573 = vunpack.c.h.b16 %v95
  %v574 = vunpack.c.l.b16 %v96
  %v575 = vunpack.c.l.b16 %v97
  %v576 = vunpack.c.h.b16 %v97
  %v577 = vunpack.c.l.b16 %v98
  %v578 = vunpack.c.l.b16 %v99
  %v579 = vunpack.c.h.b16 %v99
  %v580 = vunpack.c.l.b16 %v100
  %v581 = vunpack.c.l.b16 %v101
  %v582 = vunpack.c.h.b16 %v101
  %v583 = vunpack.c.l.b16 %v102
  %v584 = vunpack.c.l.b16 %v103
  %v585 = vunpack.c.h.b16 %v103
  %v586 = vunpack.c.l.b16 %v104
  %v587 = vunpack.c.l.b16 %v105
  %v588 = vunpack.c.h.b16 %v105
  %v589 = vunpack.c.l.b16 %v106
  %v590 = vunpack.c.l.b16 %v107
  %v591 = vunpack.c.h.b16 %v107
  %v592 = vunpack.c.l.b16 %v108
  %v593 = vunpack.c.l.b16 %v109
  %v594 = vunpack.c.h.b16 %v109
  %v595 = vunpack.c.l.b16 %v110
  %v596 = vunpack.c.l.b16 %v111
  %v597 = vunpack.c.h.b16 %v111
  %v598 = vunpack.c.l.b16 %v112
  %v599 = vunpack.c.l.b16 %v113
  %v600 = vunpack.c.h.b16 %v113
  %v601 = vunpack.c.l.b16 %v114
  %v602 = vunpack.c.l.b16 %v115
  %v603 = vunpack.c.h.b16 %v115
  %v604 = vunpack.c.l.b16 %v116
  %v605 = vunpack.c.l.b16 %v117
  %v606 = vunpack.c.h.b16 %v117
  %v607 = vunpack.c.l.b16 %v118
  %v608 = vunpack.c.l.b16 %v119
  %v609 = vunpack.c.h.b16 %v119
  %v610 = vunpack.c.l.b16 %v120
  %v611 = vunpack.c.l.b16 %v121
  %v612 = vunpack.c.h.b16 %v121
  %v613 = vunpack.c.l.b16 %v122
  %v614 = vunpack.c.l.b16 %v123
  %v615 = vunpack.c.h.b16 %v123
  %v616 = vunpack.c.l.b16 %v124
  %v617 = vunpack.c.l.b16 %v125
  %v618 = vunpack.c.h.b16 %v125
  %v619 = vunpack.c.l.b16 %v126
  %v620 = vunpack.c.l.b16 %v127
  %v621 = vunpack.c.h.b16 %v127
  %v622 = vunpack.c.l.b16 %v128
  %v623 = vunpack.c.l.b16 %v129
  %v624 = vunpack.c.h.b16 %v129
  %v625 = vunpack.c.l.b16 %v130
  %v626 = vunpack.c.l.b16 %v131
  %v627 = vunpack.c.h.b16 %v131
  %v628 = vunpack.c.l.b16 %v132
  %v629 = vunpack.c.l.b16 %v133
  %v630 = vunpack.c.h.b16 %v133
  %v631 = vunpack.c.l.b16 %v134
  %v632 = vunpack.c.l.b16 %v135
  %v633 = vunpack.c.h.b16 %v135
  %v634 = vunpack.c.l.b16 %v136
  %v635 = vunpack.c.l.b16 %v137
  %v636 = vunpack.c.h.b16 %v137
  %v637 = vunpack.c.l.b16 %v138
  %v638 = vunpack.c.l.b16 %v139
  %v639 = vunpack.c.h.b16 %v139
  %v640 = vunpack.c.l.b16 %v140
  %v641 = vunpack.c.l.b16 %v141
  %v642 = vunpack.c.h.b16 %v141
  %v643 = vunpack.c.l.b16 %v142
  %v644 = vunpack.c.l.b16 %v143
  %v645 = vunpack.c.h.b16 %v143
  %v646 = vunpack.c.l.b16 %v144
  %v647 = vunpack.c.l.b16 %v145
  %v648 = vunpack.c.h.b16 %v145
  %v649 = vunpack.c.l.b16 %v146
  %v650 = vunpack.c.l.b16 %v147
  %v651 = vunpack.c.h.b16 %v147
  %v652 = vunpack.c.l.b16 %v148
  %v653 = vunpack.c.l.b16 %v149
  %v654 = vunpack.c.h.b16 %v149
  %v655 = vunpack.c.l.b16 %v150
  %v656 = vunpack.c.l.b16 %v151
  %v657 = vunpack.c.h.b16 %v151
  %v658 = vunpack.c.l.b16 %v152
  %v659 = vunpack.c.l.b16 %v153
  %v660 = vunpack.c.h.b16 %v153
  %v661 = vunpack.c.l.b16 %v154
  %v662 = vunpack.c.l.b16 %v155
  %v663 = vunpack.c.h.b16 %v155
  %v664 = vunpack.c.l.b16 %v156
  %v665 = vunpack.c.l.b16 %v157
  %v666 = vunpack.c.h.b16 %v157
  %v667 = vunpack.c.l.b16 %v158
  %v668 = vunpack.c.l.b16 %v159
  %v669 = vunpack.c.h.b16 %v159
  %v670 = vunpack.c.l.b16 %v160
  %v671 = vunpack.c.l.b16 %v161
  %v672 = vunpack.c.h.b16 %v161
  %v673 = vunpack.c.l.b16 %v162
  %v674 = vunpack.c.l.b16 %v163
  %v675 = vunpack.c.h.b16 %v163
  %v676 = vunpack.c.l.b16 %v164
  %v677 = vunpack.c.l.b16 %v165
  %v678 = vunpack.c.h.b16 %v165
  %v679 = vunpack.c.l.b16 %v166
  %v680 = vunpack.c.l.b16 %v167
  %v681 = vunpack.c.h.b16 %v167
  %v682 = vunpack.c.l.b16 %v168
  %v683 = vunpack.c.l.b16 %v169
  %v684 = vunpack.c.h.b16 %v169
  %v685 = vunpack.c.l.b16 %v170
  %v686 = vunpack.c.l.b16 %v171
  %v687 = vunpack.c.h.b16 %v171
  %v688 = vunpack.c.l.b16 %v172
  %v689 = vunpack.c.l.b16 %v173
  %v690 = vunpack.c.h.b16 %v173
  %v691 = vunpack.c.l.b16 %v174
  %v692 = vunpack.c.l.b16 %v175
  %v693 = vunpack.c.h.b16 %v175
  %v694 = vunpack.c.l.b16 %v176
  %v695 = vunpack.c.l.b16 %v177
  %v696 = vunpack.c.h.b16 %v177
  %v697 = vunpack.c.l.b16 %v178
  %v698 = vunpack.c.l.b16 %v179
  %v699 = vunpack.c.h.b16 %v179
  %v700 = vunpack.c.l.b16 %v180
  %v701 = vunpack.c.l.b16 %v181
  %v702 = vunpack.c.h.b16 %v181
  %v703 = vunpack.c.l.b16 %v182
  %v704 = vunpack.c.l.b16 %v183
  %v705 = vunpack.c.h.b16 %v183
  %v706 = vunpack.c.l.b16 %v184
  %v707 = vunpack.c.l.b16 %v185
  %v708 = vunpack.c.h.b16 %v185
  %v709 = vunpack.c.l.b16 %v186
  %v710 = vunpack.c.l.b16 %v187
  %v711 = vunpack.c.h.b16 %v187
  %v712 = vunpack.c.l.b16 %v188
  %v713 = vunpack.c.l.b16 %v189
  %v714 = vunpack.c.h.b16 %v189
  %v715 = vunpack.c.l.b16 %v190
  %v716 = vunpack.c.l.b16 %v191
  %v717 = vunpack.c.h.b16 %v191
  %v718 = vunpack.c.l.b16 %v192
  %v719 = vunpack.c.l.b16 %v193
  %v720 = vunpack.c.h.b16 %v193
  %v721 = vunpack.c.l.b16 %v194
  %v722 = vunpack.c.l.b16 %v195
  %v723 = vunpack.c.h.b16 %v195
  %v724 = vunpack.c.l.b16 %v196
  %v725 = vunpack.c.l.b16 %v197
  %v726 = vunpack.c.h.b16 %v197
  %v727 = vunpack.c.l.b16 %v198
  %v728 = vunpack.c.l.b16 %v199
  %v729 = vunpack.c.h.b16 %v199
  %v730 = vunpack.c.l.b16 %v200
  %v731 = vunpack.c.l.b16 %v201
  %v732 = vunpack.c.h.b16 %v201
  %v733 = vunpack.c.l.b16 %v202
  %v734 = vunpack.c.l.b16 %v203
  %v735 = vunpack.c.h.b16 %v203
  %v736 = vunpack.c.l.b16 %v204
  %v737 = vunpack.c.l.b16 %v205
  %v738 = vunpack.c.h.b16 %v205
  %v739 = vunpack.c.l.b16 %v206
  %v740 = vunpack.c.l.b16 %v207
  %v741 = vunpack.c.h.b16 %v207
  %v742 = vunpack.c.l.b16 %v208
  %v743 = vunpack.c.l.b16 %v209
  %v744 = vunpack.c.h.b16 %v209
  %v745 = vunpack.c.l.b16 %v210
  %v746 = vunpack.c.l.b16 %v211
  %v747 = vunpack.c.h.b16 %v211
  %v748 = vunpack.c.l.b16 %v212
  %v749 = vunpack.c.l.b16 %v213
  %v750 = vunpack.c.h.b16 %v213
  %v751 = vunpack.c.l.b16 %v214
  %v752 = vunpack.c.l.b16 %v215
  %v753 = vunpack.c.h.b16 %v215
  %v754 = vunpack.c.l.b16 %v216
  %v755 = vunpack.c.l.b16 %v217
  %v756 = vunpack.c.h.b16 %v217
  %v757 = vunpack.c.l.b16 %v218
  %v758 = vunpack.c.l.b16 %v219
  %v759 = vunpack.c.h.b16 %v219
  %v760 = vunpack.c.l.b16 %v220
  %v761 = vunpack.c.l.b16 %v221
  %v762 = vunpack.c.h.b16 %v221
  %v763 = vunpack.c.l.b16 %v222
  %v764 = vunpack.c.l.b16 %v223
  %v765 = vunpack.c.h.b16 %v223
  %v766 = vunpack.c.l.b16 %v224
  %v767 = vpack.c.b16 %v476, %v473
  %v768 = vpack.c.b16 %v477, %v474
  %v769 = vpack.c.b16 %v478, %v475
  %v770 = vpack.c.b16 %v482, %v479
  %v771 = vpack.c.b16 %v483, %v480
  %v772 = vpack.c.b16 %v484, %v481
  %v773 = vpack.c.b16 %v488, %v485
  %v774 = vpack.c.b16 %v489, %v486
  %v775 = vpack.c.b16 %v490, %v487
  %v776 = vpack.c.b16 %v494, %v491
  %v777 = vpack.c.b16 %v495, %v492
  %v778 = vpack.c.b16 %v496, %v493
  %v779 = vpack.c.b16 %v500, %v497
  %v780 = vpack.c.b16 %v501, %v498
  %v781 = vpack.c.b16 %v502, %v499
  %v782 = vpack.c.b16 %v506, %v503
  %v783 = vpack.c.b16 %v507, %v504
  %v784 = vpack.c.b16 %v508, %v505
  %v785 = vpack.c.b16 %v512, %v509
  %v786 = vpack.c.b16 %v513, %v510
  %v787 = vpack.c.b16 %v514, %v511
  %v788 = vpack.c.b16 %v518, %v515
  %v789 = vpack.c.b16 %v519, %v516
  %v790 = vpack.c.b16 %v520, %v517
  %v791 = vpack.c.b16 %v524, %v521
  %v792 = vpack.c.b16 %v525, %v522
  %v793 = vpack.c.b16 %v526, %v523
  %v794 = vpack.c.b16 %v530, %v527
  %v795 = vpack.c.b16 %v531, %v528
  %v796 = vpack.c.b16 %v532, %v529
  %v797 = vpack.c.b16 %v536, %v533
  %v798 = vpack.c.b16 %v537, %v534
  %v799 = vpack.c.b16 %v538, %v535
  %v800 = vpack.c.b16 %v542, %v539
  %v801 = vpack.c.b16 %v543, %v540
  %v802 = vpack.c.b16 %v544, %v541
  %v803 = vpack.c.b16 %v548, %v545
  %v804 = vpack.c.b16 %v549, %v546
  %v805 = vpack.c.b16 %v550, %v547
  %v806 = vpack.c.b16 %v554, %v551
  %v807 = vpack.c.b16 %v555, %v552
  %v808 = vpack.c.b16 %v556, %v553
  %v809 = vpack.c.b16 %v560, %v557
  %v810 = vpack.c.b16 %v561, %v558
  %v811 = vpack.c.b16 %v562, %v559
  %v812 = vpack.c.b16 %v566, %v563
  %v813 = vpack.c.b16 %v567, %v564
  %v814 = vpack.c.b16 %v568, %v565
  %v815 = vpack.c.b16 %v572, %v569
  %v816 = vpack.c.b16 %v573, %v570
  %v817 = vpack.c.b16 %v574, %v571
  %v818 = vpack.c.b16 %v578, %v575
  %v819 = vpack.c.b16 %v579, %v576
  %v820 = vpack.c.b16 %v580, %v577
  %v821 = vpack.c.b16 %v584, %v581
  %v822 = vpack.c.b16 %v585, %v582
  %v823 = vpack.c.b16 %v586, %v583
  %v824 = vpack.c.b16 %v590, %v587
  %v825 = vpack.c.b16 %v591, %v588
  %v826 = vpack.c.b16 %v592, %v589
  %v827 = vpack.c.b16 %v596, %v593
  %v828 = vpack.c.b16 %v597, %v594
  %v829 = vpack.c.b16 %v598, %v595
  %v830 = vpack.c.b16 %v602, %v599
  %v831 = vpack.c.b16 %v603, %v600
  %v832 = vpack.c.b16 %v604, %v601
  %v833 = vpack.c.b16 %v608, %v605
  %v834 = vpack.c.b16 %v609, %v606
  %v835 = vpack.c.b16 %v610, %v607
  %v836 = vpack.c.b16 %v614, %v611
  %v837 = vpack.c.b16 %v615, %v612
  %v838 = vpack.c.b16 %v616, %v613
  %v839 = vpack.c.b16 %v620, %v617
  %v840 = vpack.c.b16 %v621, %v618
  %v841 = vpack.c.b16 %v622, %v619
  %v842 = vpack.c.b16 %v626, %v623
  %v843 = vpack.c.b16 %v627, %v624
  %v844 = vpack.c.b16 %v628, %v625
  %v845 = vpack.c.b16 %v632, %v629
  %v846 = vpack.c.b16 %v633, %v630
  %v847 = vpack.c.b16 %v634, %v631
  %v848 = vpack.c.b16 %v638, %v635
  %v849 = vpack.c.b16 %v639, %v636
  %v850 = vpack.c.b16 %v640, %v637
  %v851 = vpack.c.b16 %v644, %v641
  %v852 = vpack.c.b16 %v645, %v642
  %v853 = vpack.c.b16 %v646, %v643
  %v854 = vpack.c.b16 %v650, %v647
  %v855 = vpack.c.b16 %v651, %v648
  %v856 = vpack.c.b16 %v652, %v649
  %v857 = vpack.c.b16 %v656, %v653
  %v858 = vpack.c.b16 %v657, %v654
  %v859 = vpack.c.b16 %v658, %v655
  %v860 = vpack.c.b16 %v662, %v659
  %v861 = vpack.c.b16 %v663, %v660
  %v862 = vpack.c.b16 %v664, %v661
  %v863 = vpack.c.b16 %v668, %v665
  %v864 = vpack.c.b16 %v669, %v666
  %v865 = vpack.c.b16 %v670, %v667
  %v866 = vpack.c.b16 %v674, %v671
  %v867 = vpack.c.b16 %v675, %v672
  %v868 = vpack.c.b16 %v676, %v673
  %v869 = vpack.c.b16 %v680, %v677
  %v870 = vpack.c.b16 %v681, %v678
  %v871 = vpack.c.b16 %v682, %v679
  %v872 = vpack.c.b16 %v686, %v683
  %v873 = vpack.c.b16 %v687, %v684
  %v874 = vpack.c.b16 %v688, %v685
  %v875 = vpack.c.b16 %v692, %v689
  %v876 = vpack.c.b16 %v693, %v690
  %v877 = vpack.c.b16 %v694, %v691
  %v878 = vpack.c.b16 %v698, %v695
  %v879 = vpack.c.b16 %v699, %v696
  %v880 = vpack.c.b16 %v700, %v697
  %v881 = vpack.c.b16 %v704, %v701
  %v882 = vpack.c.b16 %v705, %v702
  %v883 = vpack.c.b16 %v706, %v703
  %v884 = vpack.c.b16 %v710, %v707
  %v885 = vpack.c.b16 %v711, %v708
  %v886 = vpack.c.b16 %v712, %v709
  %v887 = vpack.c.b16 %v716, %v713
  %v888 = vpack.c.b16 %v717, %v714
  %v889 = vpack.c.b16 %v718, %v715
  %v890 = vpack.c.b16 %v722, %v719
  %v891 = vpack.c.b16 %v723, %v720
  %v892 = vpack.c.b16 %v724, %v721
  %v893 = vpack.c.b16 %v728, %v725
  %v894 = vpack.c.b16 %v729, %v726
  %v895 = vpack.c.b16 %v730, %v727
  %v896 = vpack.c.b16 %v734, %v731
  %v897 = vpack.c.b16 %v735, %v732
  %v898 = vpack.c.b16 %v736, %v733
  %v899 = vpack.c.b16 %v740, %v737
  %v900 = vpack.c.b16 %v741, %v738
  %v901 = vpack.c.b16 %v742, %v739
  %v902 = vpack.c.b16 %v746, %v743
  %v903 = vpack.c.b16 %v747, %v744
  %v904 = vpack.c.b16 %v748, %v745
  %v905 = vpack.c.b16 %v752, %v749
  %v906 = vpack.c.b16 %v753, %v750
  %v907 = vpack.c.b16 %v754, %v751
  %v908 = vpack.c.b16 %v758, %v755
  %v909 = vpack.c.b16 %v759, %v756
  %v910 = vpack.c.b16 %v760, %v757
  %v911 = vpack.c.b16 %v764, %v761
  %v912 = vpack.c.b16 %v765, %v762
  %v913 = vpack.c.b16 %v766, %v763
  %vm1061 = vcmask 130048
  %v1063 = vsel %vm1061, %v270, 0
  %1065 = vmatprep.subr.bf16.mxu0 %v789
  %1066 = vmatpush1.bf16.msra.mxu0 %v788
  %1067 = vmatprep.subr.bf16.mxu0 %v786
  %1068 = vmatpush1.bf16.msra.mxu0 %v785
  %1069 = vmatprep.subr.bf16.mxu0 %v783
  %1070 = vmatpush1.bf16.msra.mxu0 %v782
  %1071 = vmatprep.subr.bf16.mxu0 %v780
  %1072 = vmatpush1.bf16.msra.mxu0 %v779
  %1073 = vmatprep.subr.bf16.mxu0 %v777
  %1074 = vmatpush1.bf16.msra.mxu0 %v776
  %1075 = vmatprep.subr.bf16.mxu0 %v774
  %1076 = vmatpush1.bf16.msra.mxu0 %v773
  %1077 = vmatprep.subr.bf16.mxu0 %v771
  %1078 = vmatpush1.bf16.msra.mxu0 %v770
  %1079 = vmatprep.subr.bf16.mxu0 %v768
  %1080 = vmatpush1.bf16.msra.mxu0 %v767
  %1081 = vmatprep.subr.bf16.mxu0 %v813
  %1082 = vmatpush2.bf16.msra.mxu0 %v812
  %1083 = vmatprep.subr.bf16.mxu0 %v810
  %1084 = vmatpush2.bf16.msra.mxu0 %v809
  %1085 = vmatprep.subr.bf16.mxu0 %v807
  %1086 = vmatpush2.bf16.msra.mxu0 %v806
  %1087 = vmatprep.subr.bf16.mxu0 %v804
  %1088 = vmatpush2.bf16.msra.mxu0 %v803
  %1089 = vmatprep.subr.bf16.mxu0 %v801
  %1090 = vmatpush2.bf16.msra.mxu0 %v800
  %1091 = vmatprep.subr.bf16.mxu0 %v798
  %1092 = vmatpush2.bf16.msra.mxu0 %v797
  %1093 = vmatprep.subr.bf16.mxu0 %v795
  %1094 = vmatpush2.bf16.msra.mxu0 %v794
  %1095 = vmatprep.subr.bf16.mxu0 %v792
  %1096 = vmatpush2.bf16.msra.mxu0 %v791
  %1097 = vmatprep.mubr.bf16.mxu0 %v265
  %1098 = vmatmul.mubr.bf16.gmra.mxu0 %v264
  %v1099 = vpop.f32.mrf.mxu0
  %v1100 = vadd.f32 %v230, %v1099
  %v1101 = vpop.f32.mrf.mxu0
  %v1102 = vadd.f32 %v234, %v1101
  %v1103 = vpop.f32.mrf.mxu0
  %v1104 = vadd.f32 %v230, %v1103
  %v1105 = vpop.f32.mrf.mxu0
  %v1106 = vadd.f32 %v234, %v1105
  %1107 = vdwg.mxu0
  %1108 = vmatprep.subr.bf16.mxu0 %v837
  %1109 = vmatpush1.bf16.msra.mxu0 %v836
  %1110 = vmatprep.subr.bf16.mxu0 %v834
  %1111 = vmatpush1.bf16.msra.mxu0 %v833
  %1112 = vmatprep.subr.bf16.mxu0 %v831
  %1113 = vmatpush1.bf16.msra.mxu0 %v830
  %1114 = vmatprep.subr.bf16.mxu0 %v828
  %1115 = vmatpush1.bf16.msra.mxu0 %v827
  %1116 = vmatprep.subr.bf16.mxu0 %v825
  %1117 = vmatpush1.bf16.msra.mxu0 %v824
  %1118 = vmatprep.subr.bf16.mxu0 %v822
  %1119 = vmatpush1.bf16.msra.mxu0 %v821
  %1120 = vmatprep.subr.bf16.mxu0 %v819
  %1121 = vmatpush1.bf16.msra.mxu0 %v818
  %1122 = vmatprep.subr.bf16.mxu0 %v816
  %1123 = vmatpush1.bf16.msra.mxu0 %v815
  %1124 = vmatprep.subr.bf16.mxu0 %v861
  %1125 = vmatpush2.bf16.msra.mxu0 %v860
  %1126 = vmatprep.subr.bf16.mxu0 %v858
  %1127 = vmatpush2.bf16.msra.mxu0 %v857
  %1128 = vmatprep.subr.bf16.mxu0 %v855
  %1129 = vmatpush2.bf16.msra.mxu0 %v854
  %1130 = vmatprep.subr.bf16.mxu0 %v852
  %1131 = vmatpush2.bf16.msra.mxu0 %v851
  %1132 = vmatprep.subr.bf16.mxu0 %v849
  %1133 = vmatpush2.bf16.msra.mxu0 %v848
  %1134 = vmatprep.subr.bf16.mxu0 %v846
  %1135 = vmatpush2.bf16.msra.mxu0 %v845
  %1136 = vmatprep.subr.bf16.mxu0 %v843
  %1137 = vmatpush2.bf16.msra.mxu0 %v842
  %1138 = vmatprep.subr.bf16.mxu0 %v840
  %1139 = vmatpush2.bf16.msra.mxu0 %v839
  %1140 = vmatprep.mubr.bf16.mxu0 %v267
  %1141 = vmatmul.mubr.bf16.gmra.mxu0 %v266
  %v1142 = vpop.f32.mrf.mxu0
  %v1143 = vadd.f32 %v1100, %v1142
  %v1144 = vpop.f32.mrf.mxu0
  %v1145 = vadd.f32 %v1102, %v1144
  %v1146 = vpop.f32.mrf.mxu0
  %v1147 = vadd.f32 %v1104, %v1146
  %v1148 = vpop.f32.mrf.mxu0
  %v1149 = vadd.f32 %v1106, %v1148
  %1150 = vdwg.mxu0
  %1151 = vmatprep.subr.bf16.mxu0 %v885
  %1152 = vmatpush1.bf16.msra.mxu0 %v884
  %1153 = vmatprep.subr.bf16.mxu0 %v882
  %1154 = vmatpush1.bf16.msra.mxu0 %v881
  %1155 = vmatprep.subr.bf16.mxu0 %v879
  %1156 = vmatpush1.bf16.msra.mxu0 %v878
  %1157 = vmatprep.subr.bf16.mxu0 %v876
  %1158 = vmatpush1.bf16.msra.mxu0 %v875
  %1159 = vmatprep.subr.bf16.mxu0 %v873
  %1160 = vmatpush1.bf16.msra.mxu0 %v872
  %1161 = vmatprep.subr.bf16.mxu0 %v870
  %1162 = vmatpush1.bf16.msra.mxu0 %v869
  %1163 = vmatprep.subr.bf16.mxu0 %v867
  %1164 = vmatpush1.bf16.msra.mxu0 %v866
  %1165 = vmatprep.subr.bf16.mxu0 %v864
  %1166 = vmatpush1.bf16.msra.mxu0 %v863
  %1167 = vmatprep.subr.bf16.mxu0 %v909
  %1168 = vmatpush2.bf16.msra.mxu0 %v908
  %1169 = vmatprep.subr.bf16.mxu0 %v906
  %1170 = vmatpush2.bf16.msra.mxu0 %v905
  %1171 = vmatprep.subr.bf16.mxu0 %v903
  %1172 = vmatpush2.bf16.msra.mxu0 %v902
  %1173 = vmatprep.subr.bf16.mxu0 %v900
  %1174 = vmatpush2.bf16.msra.mxu0 %v899
  %1175 = vmatprep.subr.bf16.mxu0 %v897
  %1176 = vmatpush2.bf16.msra.mxu0 %v896
  %1177 = vmatprep.subr.bf16.mxu0 %v894
  %1178 = vmatpush2.bf16.msra.mxu0 %v893
  %1179 = vmatprep.subr.bf16.mxu0 %v891
  %1180 = vmatpush2.bf16.msra.mxu0 %v890
  %1181 = vmatprep.subr.bf16.mxu0 %v888
  %1182 = vmatpush2.bf16.msra.mxu0 %v887
  %1183 = vmatprep.mubr.bf16.mxu0 %v269
  %1184 = vmatmul.mubr.bf16.gmra.mxu0 %v268
  %v1185 = vpop.f32.mrf.mxu0
  %v1186 = vadd.f32 %v1143, %v1185
  %v1187 = vpop.f32.mrf.mxu0
  %v1188 = vadd.f32 %v1145, %v1187
  %v1189 = vpop.f32.mrf.mxu0
  %v1190 = vadd.f32 %v1147, %v1189
  %v1191 = vpop.f32.mrf.mxu0
  %v1192 = vadd.f32 %v1149, %v1191
  %1193 = vdwg.mxu0
  %1194 = vmatprep.subr.bf16.mxu0 0
  %1195 = vmatpush1.bf16.msra.mxu0 0
  %1196 = vmatprep.subr.bf16.mxu0 0
  %1197 = vmatpush1.bf16.msra.mxu0 0
  %1198 = vmatprep.subr.bf16.mxu0 0
  %1199 = vmatpush1.bf16.msra.mxu0 0
  %1200 = vmatprep.subr.bf16.mxu0 0
  %1201 = vmatpush1.bf16.msra.mxu0 0
  %1202 = vmatprep.subr.bf16.mxu0 0
  %1203 = vmatpush1.bf16.msra.mxu0 0
  %1204 = vmatprep.subr.bf16.mxu0 0
  %1205 = vmatpush1.bf16.msra.mxu0 0
  %1206 = vmatprep.subr.bf16.mxu0 0
  %1207 = vmatpush1.bf16.msra.mxu0 0
  %1208 = vmatprep.subr.bf16.mxu0 %v912
  %1209 = vmatpush1.bf16.msra.mxu0 %v911
  %1210 = vmatprep.subr.bf16.mxu0 0
  %1211 = vmatpush2.bf16.msra.mxu0 0
  %1212 = vmatprep.subr.bf16.mxu0 0
  %1213 = vmatpush2.bf16.msra.mxu0 0
  %1214 = vmatprep.subr.bf16.mxu0 0
  %1215 = vmatpush2.bf16.msra.mxu0 0
  %1216 = vmatprep.subr.bf16.mxu0 0
  %1217 = vmatpush2.bf16.msra.mxu0 0
  %1218 = vmatprep.subr.bf16.mxu0 0
  %1219 = vmatpush2.bf16.msra.mxu0 0
  %1220 = vmatprep.subr.bf16.mxu0 0
  %1221 = vmatpush2.bf16.msra.mxu0 0
  %1222 = vmatprep.subr.bf16.mxu0 0
  %1223 = vmatpush2.bf16.msra.mxu0 0
  %1224 = vmatprep.subr.bf16.mxu0 0
  %1225 = vmatpush2.bf16.msra.mxu0 0
  %1226 = vmatprep.mubr.bf16.mxu0 0
  %1227 = vmatmul.mubr.bf16.gmra.mxu0 %v1063
  %v1228 = vpop.f32.mrf.mxu0
  %v1229 = vadd.f32 %v1186, %v1228
  %v1230 = vpop.f32.mrf.mxu0
  %v1231 = vadd.f32 %v1188, %v1230
  %v1232 = vpop.f32.mrf.mxu0
  %v1233 = vadd.f32 %v1190, %v1232
  %v1234 = vpop.f32.mrf.mxu0
  %v1235 = vadd.f32 %v1192, %v1234
  %1236 = vdwg.mxu0
  %1237 = vmatprep.subr.bf16.mxu0 0
  %1238 = vmatpush1.bf16.msra.mxu0 %v790
  %1239 = vmatprep.subr.bf16.mxu0 0
  %1240 = vmatpush1.bf16.msra.mxu0 %v787
  %1241 = vmatprep.subr.bf16.mxu0 0
  %1242 = vmatpush1.bf16.msra.mxu0 %v784
  %1243 = vmatprep.subr.bf16.mxu0 0
  %1244 = vmatpush1.bf16.msra.mxu0 %v781
  %1245 = vmatprep.subr.bf16.mxu0 0
  %1246 = vmatpush1.bf16.msra.mxu0 %v778
  %1247 = vmatprep.subr.bf16.mxu0 0
  %1248 = vmatpush1.bf16.msra.mxu0 %v775
  %1249 = vmatprep.subr.bf16.mxu0 0
  %1250 = vmatpush1.bf16.msra.mxu0 %v772
  %1251 = vmatprep.subr.bf16.mxu0 0
  %1252 = vmatpush1.bf16.msra.mxu0 %v769
  %1253 = vmatprep.subr.bf16.mxu0 0
  %1254 = vmatpush2.bf16.msra.mxu0 %v814
  %1255 = vmatprep.subr.bf16.mxu0 0
  %1256 = vmatpush2.bf16.msra.mxu0 %v811
  %1257 = vmatprep.subr.bf16.mxu0 0
  %1258 = vmatpush2.bf16.msra.mxu0 %v808
  %1259 = vmatprep.subr.bf16.mxu0 0
  %1260 = vmatpush2.bf16.msra.mxu0 %v805
  %1261 = vmatprep.subr.bf16.mxu0 0
  %1262 = vmatpush2.bf16.msra.mxu0 %v802
  %1263 = vmatprep.subr.bf16.mxu0 0
  %1264 = vmatpush2.bf16.msra.mxu0 %v799
  %1265 = vmatprep.subr.bf16.mxu0 0
  %1266 = vmatpush2.bf16.msra.mxu0 %v796
  %1267 = vmatprep.subr.bf16.mxu0 0
  %1268 = vmatpush2.bf16.msra.mxu0 %v793
  %1269 = vmatprep.mubr.bf16.mxu0 %v265
  %1270 = vmatmul.mubr.bf16.gmra.mxu0 %v264
  %v1271 = vpop.f32.mrf.mxu0
  %v1272 = vadd.f32 %v238, %v1271
  %v1273 = vpop.f32.mrf.mxu0
  %v1274 = vpop.f32.mrf.mxu0
  %v1275 = vadd.f32 %v238, %v1274
  %v1276 = vpop.f32.mrf.mxu0
  %1277 = vdwg.mxu0
  %1278 = vmatprep.subr.bf16.mxu0 0
  %1279 = vmatpush1.bf16.msra.mxu0 %v838
  %1280 = vmatprep.subr.bf16.mxu0 0
  %1281 = vmatpush1.bf16.msra.mxu0 %v835
  %1282 = vmatprep.subr.bf16.mxu0 0
  %1283 = vmatpush1.bf16.msra.mxu0 %v832
  %1284 = vmatprep.subr.bf16.mxu0 0
  %1285 = vmatpush1.bf16.msra.mxu0 %v829
  %1286 = vmatprep.subr.bf16.mxu0 0
  %1287 = vmatpush1.bf16.msra.mxu0 %v826
  %1288 = vmatprep.subr.bf16.mxu0 0
  %1289 = vmatpush1.bf16.msra.mxu0 %v823
  %1290 = vmatprep.subr.bf16.mxu0 0
  %1291 = vmatpush1.bf16.msra.mxu0 %v820
  %1292 = vmatprep.subr.bf16.mxu0 0
  %1293 = vmatpush1.bf16.msra.mxu0 %v817
  %1294 = vmatprep.subr.bf16.mxu0 0
  %1295 = vmatpush2.bf16.msra.mxu0 %v862
  %1296 = vmatprep.subr.bf16.mxu0 0
  %1297 = vmatpush2.bf16.msra.mxu0 %v859
  %1298 = vmatprep.subr.bf16.mxu0 0
  %1299 = vmatpush2.bf16.msra.mxu0 %v856
  %1300 = vmatprep.subr.bf16.mxu0 0
  %1301 = vmatpush2.bf16.msra.mxu0 %v853
  %1302 = vmatprep.subr.bf16.mxu0 0
  %1303 = vmatpush2.bf16.msra.mxu0 %v850
  %1304 = vmatprep.subr.bf16.mxu0 0
  %1305 = vmatpush2.bf16.msra.mxu0 %v847
  %1306 = vmatprep.subr.bf16.mxu0 0
  %1307 = vmatpush2.bf16.msra.mxu0 %v844
  %1308 = vmatprep.subr.bf16.mxu0 0
  %1309 = vmatpush2.bf16.msra.mxu0 %v841
  %1310 = vmatprep.mubr.bf16.mxu0 %v267
  %1311 = vmatmul.mubr.bf16.gmra.mxu0 %v266
  %v1312 = vpop.f32.mrf.mxu0
  %v1313 = vadd.f32 %v1272, %v1312
  %v1314 = vpop.f32.mrf.mxu0
  %v1315 = vpop.f32.mrf.mxu0
  %v1316 = vadd.f32 %v1275, %v1315
  %v1317 = vpop.f32.mrf.mxu0
  %1318 = vdwg.mxu0
  %1319 = vmatprep.subr.bf16.mxu0 0
  %1320 = vmatpush1.bf16.msra.mxu0 %v886
  %1321 = vmatprep.subr.bf16.mxu0 0
  %1322 = vmatpush1.bf16.msra.mxu0 %v883
  %1323 = vmatprep.subr.bf16.mxu0 0
  %1324 = vmatpush1.bf16.msra.mxu0 %v880
  %1325 = vmatprep.subr.bf16.mxu0 0
  %1326 = vmatpush1.bf16.msra.mxu0 %v877
  %1327 = vmatprep.subr.bf16.mxu0 0
  %1328 = vmatpush1.bf16.msra.mxu0 %v874
  %1329 = vmatprep.subr.bf16.mxu0 0
  %1330 = vmatpush1.bf16.msra.mxu0 %v871
  %1331 = vmatprep.subr.bf16.mxu0 0
  %1332 = vmatpush1.bf16.msra.mxu0 %v868
  %1333 = vmatprep.subr.bf16.mxu0 0
  %1334 = vmatpush1.bf16.msra.mxu0 %v865
  %1335 = vmatprep.subr.bf16.mxu0 0
  %1336 = vmatpush2.bf16.msra.mxu0 %v910
  %1337 = vmatprep.subr.bf16.mxu0 0
  %1338 = vmatpush2.bf16.msra.mxu0 %v907
  %1339 = vmatprep.subr.bf16.mxu0 0
  %1340 = vmatpush2.bf16.msra.mxu0 %v904
  %1341 = vmatprep.subr.bf16.mxu0 0
  %1342 = vmatpush2.bf16.msra.mxu0 %v901
  %1343 = vmatprep.subr.bf16.mxu0 0
  %1344 = vmatpush2.bf16.msra.mxu0 %v898
  %1345 = vmatprep.subr.bf16.mxu0 0
  %1346 = vmatpush2.bf16.msra.mxu0 %v895
  %1347 = vmatprep.subr.bf16.mxu0 0
  %1348 = vmatpush2.bf16.msra.mxu0 %v892
  %1349 = vmatprep.subr.bf16.mxu0 0
  %1350 = vmatpush2.bf16.msra.mxu0 %v889
  %1351 = vmatprep.mubr.bf16.mxu0 %v269
  %1352 = vmatmul.mubr.bf16.gmra.mxu0 %v268
  %v1353 = vpop.f32.mrf.mxu0
  %v1354 = vadd.f32 %v1313, %v1353
  %v1355 = vpop.f32.mrf.mxu0
  %v1356 = vpop.f32.mrf.mxu0
  %v1357 = vadd.f32 %v1316, %v1356
  %v1358 = vpop.f32.mrf.mxu0
  %1359 = vdwg.mxu0
  %1360 = vmatprep.subr.bf16.mxu0 0
  %1361 = vmatpush1.bf16.msra.mxu0 0
  %1362 = vmatprep.subr.bf16.mxu0 0
  %1363 = vmatpush1.bf16.msra.mxu0 0
  %1364 = vmatprep.subr.bf16.mxu0 0
  %1365 = vmatpush1.bf16.msra.mxu0 0
  %1366 = vmatprep.subr.bf16.mxu0 0
  %1367 = vmatpush1.bf16.msra.mxu0 0
  %1368 = vmatprep.subr.bf16.mxu0 0
  %1369 = vmatpush1.bf16.msra.mxu0 0
  %1370 = vmatprep.subr.bf16.mxu0 0
  %1371 = vmatpush1.bf16.msra.mxu0 0
  %1372 = vmatprep.subr.bf16.mxu0 0
  %1373 = vmatpush1.bf16.msra.mxu0 0
  %1374 = vmatprep.subr.bf16.mxu0 0
  %1375 = vmatpush1.bf16.msra.mxu0 %v913
  %1376 = vmatprep.subr.bf16.mxu0 0
  %1377 = vmatpush2.bf16.msra.mxu0 0
  %1378 = vmatprep.subr.bf16.mxu0 0
  %1379 = vmatpush2.bf16.msra.mxu0 0
  %1380 = vmatprep.subr.bf16.mxu0 0
  %1381 = vmatpush2.bf16.msra.mxu0 0
  %1382 = vmatprep.subr.bf16.mxu0 0
  %1383 = vmatpush2.bf16.msra.mxu0 0
  %1384 = vmatprep.subr.bf16.mxu0 0
  %1385 = vmatpush2.bf16.msra.mxu0 0
  %1386 = vmatprep.subr.bf16.mxu0 0
  %1387 = vmatpush2.bf16.msra.mxu0 0
  %1388 = vmatprep.subr.bf16.mxu0 0
  %1389 = vmatpush2.bf16.msra.mxu0 0
  %1390 = vmatprep.subr.bf16.mxu0 0
  %1391 = vmatpush2.bf16.msra.mxu0 0
  %1392 = vmatprep.mubr.bf16.mxu0 0
  %1393 = vmatmul.mubr.bf16.gmra.mxu0 %v1063
  %v1394 = vpop.f32.mrf.mxu0
  %v1395 = vadd.f32 %v1354, %v1394
  %v1396 = vpop.f32.mrf.mxu0
  %v1397 = vpop.f32.mrf.mxu0
  %v1398 = vadd.f32 %v1357, %v1397
  %v1399 = vpop.f32.mrf.mxu0
  %1400 = vdwg.mxu0
  %v1401 = vmax.f32 %v1229, 0.0
  %v1402 = vmax.f32 %v1231, 0.0
  %v1403 = vmax.f32 %v1395, 0.0
  %v1404 = vmax.f32 %v1233, 0.0
  %v1405 = vmax.f32 %v1235, 0.0
  %v1406 = vmax.f32 %v1398, 0.0
  %v1407 = vpack.c.bf16 %v1404, %v1401
  %v1408 = vpack.c.bf16 %v1405, %v1402
  %v1409 = vpack.c.bf16 %v1406, %v1403
  %v1410 = vld [vmem:[%s3] sm:$0xf]
  %v1411 = vld [vmem:[%s3 + $0x4] sm:$0xf]
  %v1412 = vld [vmem:[%s3 + $0x8] sm:$0xf]
  %v1413 = vld [vmem:[%s3 + $0xc] sm:$0xf]
  %v1414 = vld [vmem:[%s3 + $0x10] sm:$0xf]
  %v1415 = vld [vmem:[%s3 + $0x14] sm:$0xf]
  %v1416 = vld [vmem:[%s3 + $0x18] sm:$0xf]
  %v1417 = vld [vmem:[%s3 + $0x1c] sm:$0xf]
  %v1418 = vld [vmem:[%s3 + $0x20] sm:$0xf]
  %v1419 = vld [vmem:[%s3 + $0x24] sm:$0xf]
  %v1420 = vld [vmem:[%s3 + $0x28] sm:$0xf]
  %v1421 = vld [vmem:[%s3 + $0x2c] sm:$0xf]
  %v1422 = vld [vmem:[%s3 + $0x30] sm:$0xf]
  %v1423 = vld [vmem:[%s3 + $0x34] sm:$0xf]
  %v1424 = vld [vmem:[%s3 + $0x38] sm:$0xf]
  %v1425 = vld [vmem:[%s3 + $0x3c] sm:$0xf]
  %v1426 = vld [vmem:[%s3 + $0x40] sm:$0xf]
  %v1427 = vld [vmem:[%s3 + $0x44] sm:$0xf]
  %v1428 = vld [vmem:[%s3 + $0x48] sm:$0xf]
  %v1429 = vld [vmem:[%s3 + $0x4c] sm:$0xf]
  %v1430 = vld [vmem:[%s3 + $0x50] sm:$0xf]
  %v1431 = vld [vmem:[%s3 + $0x54] sm:$0xf]
  %v1432 = vld [vmem:[%s3 + $0x58] sm:$0xf]
  %v1433 = vld [vmem:[%s3 + $0x5c] sm:$0xf]
  %v1434 = vld [vmem:[%s3 + $0x60] sm:$0xf]
  %v1435 = vld [vmem:[%s3 + $0x64] sm:$0xf]
  %v1436 = vld [vmem:[%s3 + $0x68] sm:$0xf]
  %v1437 = vld [vmem:[%s3 + $0x6c] sm:$0xf]
  %v1438 = vld [vmem:[%s3 + $0x70] sm:$0xf]
  %v1439 = vld [vmem:[%s3 + $0x74] sm:$0xf]
  %v1440 = vld [vmem:[%s3 + $0x78] sm:$0xf]
  %v1441 = vld [vmem:[%s3 + $0x7c] sm:$0xf]
  %v1442 = vld [vmem:[%s3 + $0x80] sm:$0xf]
  %v1443 = vld [vmem:[%s3 + $0x84] sm:$0xf]
  %v1444 = vld [vmem:[%s3 + $0x88] sm:$0xf]
  %v1445 = vld [vmem:[%s3 + $0x8c] sm:$0xf]
  %v1446 = vld [vmem:[%s3 + $0x90] sm:$0xf]
  %v1447 = vld [vmem:[%s3 + $0x94] sm:$0xf]
  %v1448 = vld [vmem:[%s3 + $0x98] sm:$0xf]
  %v1449 = vld [vmem:[%s3 + $0x9c] sm:$0xf]
  %v1450 = vld [vmem:[%s3 + $0xa0] sm:$0xf]
  %v1451 = vld [vmem:[%s3 + $0xa4] sm:$0xf]
  %v1452 = vld [vmem:[%s3 + $0xa8] sm:$0xf]
  %v1453 = vld [vmem:[%s3 + $0xac] sm:$0xf]
  %v1454 = vld [vmem:[%s3 + $0xb0] sm:$0xf]
  %v1455 = vld [vmem:[%s3 + $0xb4] sm:$0xf]
  %v1456 = vld [vmem:[%s3 + $0xb8] sm:$0xf]
  %v1457 = vld [vmem:[%s3 + $0xbc] sm:$0xf]
  %v1458 = vld [vmem:[%s4] sm:$0x1]
  %v1460 = vlaneseq
  %v1461 = vshrl.u32 %v1460, 7
  %v1462 = vsub.s32 0, %v1461
  %v1463 = vrot.slane %v1458, %v1462
  %v1513 = vunpack.c.l.b16 %v1410
  %v1514 = vunpack.c.l.b16 %v1411
  %v1515 = vunpack.c.l.b16 %v1412
  %v1516 = vunpack.c.l.b16 %v1413
  %v1517 = vunpack.c.l.b16 %v1414
  %v1518 = vunpack.c.l.b16 %v1415
  %v1519 = vunpack.c.l.b16 %v1416
  %v1520 = vunpack.c.l.b16 %v1417
  %v1521 = vunpack.c.l.b16 %v1418
  %v1522 = vunpack.c.l.b16 %v1419
  %v1523 = vunpack.c.l.b16 %v1420
  %v1524 = vunpack.c.l.b16 %v1421
  %v1525 = vunpack.c.l.b16 %v1422
  %v1526 = vunpack.c.l.b16 %v1423
  %v1527 = vunpack.c.l.b16 %v1424
  %v1528 = vunpack.c.l.b16 %v1425
  %v1529 = vunpack.c.l.b16 %v1426
  %v1530 = vunpack.c.l.b16 %v1427
  %v1531 = vunpack.c.l.b16 %v1428
  %v1532 = vunpack.c.l.b16 %v1429
  %v1533 = vunpack.c.l.b16 %v1430
  %v1534 = vunpack.c.l.b16 %v1431
  %v1535 = vunpack.c.l.b16 %v1432
  %v1536 = vunpack.c.l.b16 %v1433
  %v1537 = vunpack.c.l.b16 %v1434
  %v1538 = vunpack.c.l.b16 %v1435
  %v1539 = vunpack.c.l.b16 %v1436
  %v1540 = vunpack.c.l.b16 %v1437
  %v1541 = vunpack.c.l.b16 %v1438
  %v1542 = vunpack.c.l.b16 %v1439
  %v1543 = vunpack.c.l.b16 %v1440
  %v1544 = vunpack.c.l.b16 %v1441
  %v1545 = vunpack.c.l.b16 %v1442
  %v1546 = vunpack.c.l.b16 %v1443
  %v1547 = vunpack.c.l.b16 %v1444
  %v1548 = vunpack.c.l.b16 %v1445
  %v1549 = vunpack.c.l.b16 %v1446
  %v1550 = vunpack.c.l.b16 %v1447
  %v1551 = vunpack.c.l.b16 %v1448
  %v1552 = vunpack.c.l.b16 %v1449
  %v1553 = vunpack.c.l.b16 %v1450
  %v1554 = vunpack.c.l.b16 %v1451
  %v1555 = vunpack.c.l.b16 %v1452
  %v1556 = vunpack.c.l.b16 %v1453
  %v1557 = vunpack.c.l.b16 %v1454
  %v1558 = vunpack.c.l.b16 %v1455
  %v1559 = vunpack.c.l.b16 %v1456
  %v1560 = vunpack.c.l.b16 %v1457
  %v1561 = vpack.c.b16 %v1514, %v1513
  %v1562 = vpack.c.b16 %v1516, %v1515
  %v1563 = vpack.c.b16 %v1518, %v1517
  %v1564 = vpack.c.b16 %v1520, %v1519
  %v1565 = vpack.c.b16 %v1522, %v1521
  %v1566 = vpack.c.b16 %v1524, %v1523
  %v1567 = vpack.c.b16 %v1526, %v1525
  %v1568 = vpack.c.b16 %v1528, %v1527
  %v1569 = vpack.c.b16 %v1530, %v1529
  %v1570 = vpack.c.b16 %v1532, %v1531
  %v1571 = vpack.c.b16 %v1534, %v1533
  %v1572 = vpack.c.b16 %v1536, %v1535
  %v1573 = vpack.c.b16 %v1538, %v1537
  %v1574 = vpack.c.b16 %v1540, %v1539
  %v1575 = vpack.c.b16 %v1542, %v1541
  %v1576 = vpack.c.b16 %v1544, %v1543
  %v1577 = vpack.c.b16 %v1546, %v1545
  %v1578 = vpack.c.b16 %v1548, %v1547
  %v1579 = vpack.c.b16 %v1550, %v1549
  %v1580 = vpack.c.b16 %v1552, %v1551
  %v1581 = vpack.c.b16 %v1554, %v1553
  %v1582 = vpack.c.b16 %v1556, %v1555
  %v1583 = vpack.c.b16 %v1558, %v1557
  %v1584 = vpack.c.b16 %v1560, %v1559
  %1609 = vmatprep.subr.bf16.mxu0 0
  %1610 = vmatpush1.bf16.msra.mxu0 %v1568
  %1611 = vmatprep.subr.bf16.mxu0 0
  %1612 = vmatpush1.bf16.msra.mxu0 %v1567
  %1613 = vmatprep.subr.bf16.mxu0 0
  %1614 = vmatpush1.bf16.msra.mxu0 %v1566
  %1615 = vmatprep.subr.bf16.mxu0 0
  %1616 = vmatpush1.bf16.msra.mxu0 %v1565
  %1617 = vmatprep.subr.bf16.mxu0 0
  %1618 = vmatpush1.bf16.msra.mxu0 %v1564
  %1619 = vmatprep.subr.bf16.mxu0 0
  %1620 = vmatpush1.bf16.msra.mxu0 %v1563
  %1621 = vmatprep.subr.bf16.mxu0 0
  %1622 = vmatpush1.bf16.msra.mxu0 %v1562
  %1623 = vmatprep.subr.bf16.mxu0 0
  %1624 = vmatpush1.bf16.msra.mxu0 %v1561
  %1625 = vmatprep.subr.bf16.mxu0 0
  %1626 = vmatpush2.bf16.msra.mxu0 %v1576
  %1627 = vmatprep.subr.bf16.mxu0 0
  %1628 = vmatpush2.bf16.msra.mxu0 %v1575
  %1629 = vmatprep.subr.bf16.mxu0 0
  %1630 = vmatpush2.bf16.msra.mxu0 %v1574
  %1631 = vmatprep.subr.bf16.mxu0 0
  %1632 = vmatpush2.bf16.msra.mxu0 %v1573
  %1633 = vmatprep.subr.bf16.mxu0 0
  %1634 = vmatpush2.bf16.msra.mxu0 %v1572
  %1635 = vmatprep.subr.bf16.mxu0 0
  %1636 = vmatpush2.bf16.msra.mxu0 %v1571
  %1637 = vmatprep.subr.bf16.mxu0 0
  %1638 = vmatpush2.bf16.msra.mxu0 %v1570
  %1639 = vmatprep.subr.bf16.mxu0 0
  %1640 = vmatpush2.bf16.msra.mxu0 %v1569
  %1641 = vmatprep.mubr.bf16.mxu0 %v1408
  %1642 = vmatmul.mubr.bf16.gmra.mxu0 %v1407
  %v1643 = vpop.f32.mrf.mxu0
  %v1644 = vadd.f32 %v1463, %v1643
  %v1645 = vpop.f32.mrf.mxu0
  %v1646 = vpop.f32.mrf.mxu0
  %v1647 = vadd.f32 %v1463, %v1646
  %v1648 = vpop.f32.mrf.mxu0
  %1649 = vdwg.mxu0
  %1650 = vmatprep.subr.bf16.mxu0 0
  %1651 = vmatpush1.bf16.msra.mxu0 %v1584
  %1652 = vmatprep.subr.bf16.mxu0 0
  %1653 = vmatpush1.bf16.msra.mxu0 %v1583
  %1654 = vmatprep.subr.bf16.mxu0 0
  %1655 = vmatpush1.bf16.msra.mxu0 %v1582
  %1656 = vmatprep.subr.bf16.mxu0 0
  %1657 = vmatpush1.bf16.msra.mxu0 %v1581
  %1658 = vmatprep.subr.bf16.mxu0 0
  %1659 = vmatpush1.bf16.msra.mxu0 %v1580
  %1660 = vmatprep.subr.bf16.mxu0 0
  %1661 = vmatpush1.bf16.msra.mxu0 %v1579
  %1662 = vmatprep.subr.bf16.mxu0 0
  %1663 = vmatpush1.bf16.msra.mxu0 %v1578
  %1664 = vmatprep.subr.bf16.mxu0 0
  %1665 = vmatpush1.bf16.msra.mxu0 %v1577
  %1666 = vmatprep.subr.bf16.mxu0 0
  %1667 = vmatpush2.bf16.msra.mxu0 0
  %1668 = vmatprep.subr.bf16.mxu0 0
  %1669 = vmatpush2.bf16.msra.mxu0 0
  %1670 = vmatprep.subr.bf16.mxu0 0
  %1671 = vmatpush2.bf16.msra.mxu0 0
  %1672 = vmatprep.subr.bf16.mxu0 0
  %1673 = vmatpush2.bf16.msra.mxu0 0
  %1674 = vmatprep.subr.bf16.mxu0 0
  %1675 = vmatpush2.bf16.msra.mxu0 0
  %1676 = vmatprep.subr.bf16.mxu0 0
  %1677 = vmatpush2.bf16.msra.mxu0 0
  %1678 = vmatprep.subr.bf16.mxu0 0
  %1679 = vmatpush2.bf16.msra.mxu0 0
  %1680 = vmatprep.subr.bf16.mxu0 0
  %1681 = vmatpush2.bf16.msra.mxu0 0
  %1682 = vmatprep.mubr.bf16.mxu0 0
  %1683 = vmatmul.mubr.bf16.gmra.mxu0 %v1409
  %v1684 = vpop.f32.mrf.mxu0
  %v1685 = vadd.f32 %v1644, %v1684
  %v1686 = vpop.f32.mrf.mxu0
  %v1687 = vpop.f32.mrf.mxu0
  %v1688 = vadd.f32 %v1647, %v1687
  %v1689 = vpop.f32.mrf.mxu0
  %1690 = vdwg.mxu0
  %1691 = vst [vmem:[%s5] sm:$0xff] %v1685
  %1692 = vst [vmem:[%s5 + $0x8] sm:$0xff] %v1688
  // Predicated region
  $region22: #{mlp_forward.1} parent=0 // pred_check
    _
  $region23: #{mlp_forward.1} parent=0 // pred_check_branch
    %1694 = sbr.rel (0) target = $region25
  $region24: #{mlp_forward.1} parent=0 // pred_region
    _
  $region25: #{mlp_forward.1} parent=0 // pred_fallthru
    _
  // Predicated region
  $region26: #{mlp_forward.1} parent=0 // pred_check
    _
  $region27: #{mlp_forward.1} parent=0 // pred_check_branch
    %1696 = sbr.rel (0) target = $region29
  $region28: #{mlp_forward.1} parent=0 // pred_region
    _
  $region29: #{mlp_forward.1} parent=0 // pred_fallthru
    _

</llo_original>
